<compile_context>
chip_gen: v6e
topology: v6e:2x2x1
jax: 0.10.0
libtpu: 0.0.40
codegen_flags: <defaults>
</compile_context>

<pallas_src>
import jax
import jax.numpy as jnp
from jax.experimental import pallas as pl
from jax.experimental.pallas import tpu as pltpu


def _gamut_projection_kernel(x_ref, w_ref, o_ref):
    # x_ref: (C, TB, 128) VMEM tile  (channel, sublane-blocks, lanes)
    # w_ref: (C, C)       SMEM scalars, [in_ch, out_ch]
    # o_ref: (C, TB, 128) VMEM tile
    c = x_ref.shape[0]
    for j in range(c):                       # static unroll: 5 output channels
        acc = x_ref[0] * w_ref[0, j]         # (TB, 128) dense vreg tiles
        for k in range(1, c):                # strips re-read per j -> no spills
            acc = acc + x_ref[k] * w_ref[k, j]   # VPU scalar*vector FMA
        # sigmoid(z) = 0.5*tanh(0.5*z) + 0.5  (single EUP tanh + 2 VALU ops)
        o_ref[j] = (0.5 * jnp.tanh(0.5 * acc) + 0.5).astype(o_ref.dtype)


def _pick_tb(nb: int, tb_max: int, min_steps: int) -> int:
    """Pick the block-axis tile (in units of 128-sample blocks)."""
    if nb <= 8:
        return nb                            # single block == full dim (legal)
    # Aim for >= min_steps grid steps (megacore), capped at tb_max,
    # floored to a multiple of 8 (sublane constraint).
    tb = min(tb_max, max(1, -(-nb // min_steps)))
    tb = max(8, (tb // 8) * 8)
    return tb


def gamut_projection(x: jax.Array, proj_matrix: jax.Array, *,
                     tb_max: int = 1024, min_steps: int = 8) -> jax.Array:
    """sigmoid(x @ proj_matrix) via a lane/sublane-dense Pallas kernel.

    x: (N, C) float32, proj_matrix: (C, C). Returns (N, C).
    tb_max=1024 blocks -> 128K samples / ~2.6 MiB f32 per buffer.
    """
    n, c = x.shape
    assert proj_matrix.shape == (c, c)

    # Channel-major: samples on the fast (lane) axis.
    x_t = x.T                                          # (c, n)

    # Pad only up to the next multiple of 128 so the reshape below is free.
    n_pad = ((n + 127) // 128) * 128
    if n_pad != n:
        x_t = jnp.pad(x_t, ((0, 0), (0, n_pad - n)))
    nb = n_pad // 128
    x3 = x_t.reshape(c, nb, 128)                       # free row-major reshape

    tb = _pick_tb(nb, tb_max, min_steps)
    grid = (pl.cdiv(nb, tb),)                          # partial last block OK

    out3 = pl.pallas_call(
        _gamut_projection_kernel,
        out_shape=jax.ShapeDtypeStruct((c, nb, 128), x.dtype),
        grid_spec=pltpu.PrefetchScalarGridSpec(
            num_scalar_prefetch=0,
            grid=grid,
            in_specs=[
                # Dense (C, TB, 128) activation blocks marching along axis 1.
                pl.BlockSpec((c, tb, 128), lambda i: (0, i, 0)),
                # 5x5 weight lives in SMEM, read as scalars in the kernel.
                pl.BlockSpec(memory_space=pltpu.MemorySpace.SMEM),
            ],
            out_specs=pl.BlockSpec((c, tb, 128), lambda i: (0, i, 0)),
        ),
        compiler_params=pltpu.CompilerParams(
            # Sample-block axis is independent -> megacore-shardable (v7x).
            dimension_semantics=("parallel",),
        ),
    )(x3, proj_matrix)

    return out3.reshape(c, n_pad)[:, :n].T


def reference(x, proj_matrix):
    return jax.nn.sigmoid(x @ proj_matrix)


if __name__ == "__main__":
    c = 5
    key = jax.random.PRNGKey(0)
    k1, k2, k3, k4 = jax.random.split(key, 4)

    # Parameter init matching nn.Parameter(torch.eye(5)).
    proj_eye = jnp.eye(c, dtype=jnp.float32)
    # Also a non-trivial ("trained-like") projection matrix to exercise the
    # full 5x5 contraction.
    proj_rand = proj_eye + 0.1 * jax.random.normal(k1, (c, c), dtype=jnp.float32)

    # 1) Small batch, identity init, single tile.
    x_small = jax.random.normal(k2, (8, c), dtype=jnp.float32)
    out_small = jax.block_until_ready(gamut_projection(x_small, proj_eye))
    assert out_small.shape == (8, c)
    assert jnp.allclose(out_small, reference(x_small, proj_eye),
                        atol=1e-5, rtol=1e-5), "mismatch vs reference (small)"

    # 2) Non-multiple-of-128 batch, non-identity weights (pad-to-128 path).
    x_med = jax.random.normal(k3, (300, c), dtype=jnp.float32)
    out_med = jax.block_until_ready(gamut_projection(x_med, proj_rand))
    assert out_med.shape == (300, c)
    assert jnp.allclose(out_med, reference(x_med, proj_rand),
                        atol=1e-5, rtol=1e-5), "mismatch vs reference (medium)"

    # 3) Multi-tile grid with a partial last block (nb=12, tb=8 -> grid=2).
    x_big = jax.random.normal(k4, (1500, c), dtype=jnp.float32)
    out_big = jax.block_until_ready(gamut_projection(x_big, proj_rand))
    assert out_big.shape == (1500, c)
    assert jnp.allclose(out_big, reference(x_big, proj_rand),
                        atol=1e-5, rtol=1e-5), "mismatch vs reference (tiled)"

    print("KERNEL_OK")
</pallas_src>

<mosaic_0001>
module attributes {stable_mosaic.version = 11 : i64} {
  func.func @_gamut_projection_kernel(%arg0: i32, %arg1: memref<5x1x128xf32, #tpu.memory_space<vmem>>, %arg2: memref<5x5xf32, #tpu.memory_space<smem>>, %arg3: memref<5x1x128xf32, #tpu.memory_space<vmem>>) attributes {dimension_semantics = [#tpu.dimension_semantics<parallel>], iteration_bounds = array<i64: 1>, scalar_prefetch = 0 : i64, scratch_operands = 0 : i64, tpu.core_type = #tpu.core_type<tc>, window_params = [{transform_indices = @transform_0, window_bounds = array<i64: 5, 1, 128>}, {transform_indices = @transform_1, window_bounds = array<i64: 5, 5>}, {transform_indices = @transform_2, window_bounds = array<i64: 5, 1, 128>}]} {
    %c0 = arith.constant 0 : index
    %c0_0 = arith.constant 0 : index
    %c0_1 = arith.constant 0 : index
    %0 = vector.load %arg1[%c0, %c0_0, %c0_1] : memref<5x1x128xf32, #tpu.memory_space<vmem>>, vector<1x1x128xf32>
    %1 = vector.shape_cast %0 : vector<1x1x128xf32> to vector<1x128xf32>
    %c0_2 = arith.constant 0 : index
    %c0_3 = arith.constant 0 : index
    %2 = memref.load %arg2[%c0_2, %c0_3] : memref<5x5xf32, #tpu.memory_space<smem>>
    %3 = vector.broadcast %2 : f32 to vector<1x128xf32>
    %4 = arith.mulf %1, %3 : vector<1x128xf32>
    %c1 = arith.constant 1 : index
    %c0_4 = arith.constant 0 : index
    %c0_5 = arith.constant 0 : index
    %5 = vector.load %arg1[%c1, %c0_4, %c0_5] : memref<5x1x128xf32, #tpu.memory_space<vmem>>, vector<1x1x128xf32>
    %6 = vector.shape_cast %5 : vector<1x1x128xf32> to vector<1x128xf32>
    %c1_6 = arith.constant 1 : index
    %c0_7 = arith.constant 0 : index
    %7 = memref.load %arg2[%c1_6, %c0_7] : memref<5x5xf32, #tpu.memory_space<smem>>
    %8 = vector.broadcast %7 : f32 to vector<1x128xf32>
    %9 = arith.mulf %6, %8 : vector<1x128xf32>
    %10 = arith.addf %4, %9 : vector<1x128xf32>
    %c2 = arith.constant 2 : index
    %c0_8 = arith.constant 0 : index
    %c0_9 = arith.constant 0 : index
    %11 = vector.load %arg1[%c2, %c0_8, %c0_9] : memref<5x1x128xf32, #tpu.memory_space<vmem>>, vector<1x1x128xf32>
    %12 = vector.shape_cast %11 : vector<1x1x128xf32> to vector<1x128xf32>
    %c2_10 = arith.constant 2 : index
    %c0_11 = arith.constant 0 : index
    %13 = memref.load %arg2[%c2_10, %c0_11] : memref<5x5xf32, #tpu.memory_space<smem>>
    %14 = vector.broadcast %13 : f32 to vector<1x128xf32>
    %15 = arith.mulf %12, %14 : vector<1x128xf32>
    %16 = arith.addf %10, %15 : vector<1x128xf32>
    %c3 = arith.constant 3 : index
    %c0_12 = arith.constant 0 : index
    %c0_13 = arith.constant 0 : index
    %17 = vector.load %arg1[%c3, %c0_12, %c0_13] : memref<5x1x128xf32, #tpu.memory_space<vmem>>, vector<1x1x128xf32>
    %18 = vector.shape_cast %17 : vector<1x1x128xf32> to vector<1x128xf32>
    %c3_14 = arith.constant 3 : index
    %c0_15 = arith.constant 0 : index
    %19 = memref.load %arg2[%c3_14, %c0_15] : memref<5x5xf32, #tpu.memory_space<smem>>
    %20 = vector.broadcast %19 : f32 to vector<1x128xf32>
    %21 = arith.mulf %18, %20 : vector<1x128xf32>
    %22 = arith.addf %16, %21 : vector<1x128xf32>
    %c4 = arith.constant 4 : index
    %c0_16 = arith.constant 0 : index
    %c0_17 = arith.constant 0 : index
    %23 = vector.load %arg1[%c4, %c0_16, %c0_17] : memref<5x1x128xf32, #tpu.memory_space<vmem>>, vector<1x1x128xf32>
    %24 = vector.shape_cast %23 : vector<1x1x128xf32> to vector<1x128xf32>
    %c4_18 = arith.constant 4 : index
    %c0_19 = arith.constant 0 : index
    %25 = memref.load %arg2[%c4_18, %c0_19] : memref<5x5xf32, #tpu.memory_space<smem>>
    %26 = vector.broadcast %25 : f32 to vector<1x128xf32>
    %27 = arith.mulf %24, %26 : vector<1x128xf32>
    %28 = arith.addf %22, %27 : vector<1x128xf32>
    %cst = arith.constant 5.000000e-01 : f32
    %29 = vector.broadcast %cst : f32 to vector<1x128xf32>
    %30 = arith.mulf %29, %28 : vector<1x128xf32>
    %31 = math.tanh %30 : vector<1x128xf32>
    %cst_20 = arith.constant 5.000000e-01 : f32
    %32 = vector.broadcast %cst_20 : f32 to vector<1x128xf32>
    %33 = arith.mulf %32, %31 : vector<1x128xf32>
    %cst_21 = arith.constant 5.000000e-01 : f32
    %34 = vector.broadcast %cst_21 : f32 to vector<1x128xf32>
    %35 = arith.addf %33, %34 : vector<1x128xf32>
    %c0_22 = arith.constant 0 : index
    %c0_23 = arith.constant 0 : index
    %c0_24 = arith.constant 0 : index
    %36 = vector.load %arg3[%c0_22, %c0_23, %c0_24] : memref<5x1x128xf32, #tpu.memory_space<vmem>>, vector<1x1x128xf32>
    %37 = vector.shape_cast %36 : vector<1x1x128xf32> to vector<1x128xf32>
    %38 = vector.shape_cast %35 : vector<1x128xf32> to vector<1x1x128xf32>
    tpu.vector_store %arg3[%c0_22, %c0_23, %c0_24], %38 {strides = array<i32>} : memref<5x1x128xf32, #tpu.memory_space<vmem>>, vector<1x1x128xf32>,
    %c0_25 = arith.constant 0 : index
    %c0_26 = arith.constant 0 : index
    %c0_27 = arith.constant 0 : index
    %39 = vector.load %arg1[%c0_25, %c0_26, %c0_27] : memref<5x1x128xf32, #tpu.memory_space<vmem>>, vector<1x1x128xf32>
    %40 = vector.shape_cast %39 : vector<1x1x128xf32> to vector<1x128xf32>
    %c0_28 = arith.constant 0 : index
    %c1_29 = arith.constant 1 : index
    %41 = memref.load %arg2[%c0_28, %c1_29] : memref<5x5xf32, #tpu.memory_space<smem>>
    %42 = vector.broadcast %41 : f32 to vector<1x128xf32>
    %43 = arith.mulf %40, %42 : vector<1x128xf32>
    %c1_30 = arith.constant 1 : index
    %c0_31 = arith.constant 0 : index
    %c0_32 = arith.constant 0 : index
    %44 = vector.load %arg1[%c1_30, %c0_31, %c0_32] : memref<5x1x128xf32, #tpu.memory_space<vmem>>, vector<1x1x128xf32>
    %45 = vector.shape_cast %44 : vector<1x1x128xf32> to vector<1x128xf32>
    %c1_33 = arith.constant 1 : index
    %c1_34 = arith.constant 1 : index
    %46 = memref.load %arg2[%c1_33, %c1_34] : memref<5x5xf32, #tpu.memory_space<smem>>
    %47 = vector.broadcast %46 : f32 to vector<1x128xf32>
    %48 = arith.mulf %45, %47 : vector<1x128xf32>
    %49 = arith.addf %43, %48 : vector<1x128xf32>
    %c2_35 = arith.constant 2 : index
    %c0_36 = arith.constant 0 : index
    %c0_37 = arith.constant 0 : index
    %50 = vector.load %arg1[%c2_35, %c0_36, %c0_37] : memref<5x1x128xf32, #tpu.memory_space<vmem>>, vector<1x1x128xf32>
    %51 = vector.shape_cast %50 : vector<1x1x128xf32> to vector<1x128xf32>
    %c2_38 = arith.constant 2 : index
    %c1_39 = arith.constant 1 : index
    %52 = memref.load %arg2[%c2_38, %c1_39] : memref<5x5xf32, #tpu.memory_space<smem>>
    %53 = vector.broadcast %52 : f32 to vector<1x128xf32>
    %54 = arith.mulf %51, %53 : vector<1x128xf32>
    %55 = arith.addf %49, %54 : vector<1x128xf32>
    %c3_40 = arith.constant 3 : index
    %c0_41 = arith.constant 0 : index
    %c0_42 = arith.constant 0 : index
    %56 = vector.load %arg1[%c3_40, %c0_41, %c0_42] : memref<5x1x128xf32, #tpu.memory_space<vmem>>, vector<1x1x128xf32>
    %57 = vector.shape_cast %56 : vector<1x1x128xf32> to vector<1x128xf32>
    %c3_43 = arith.constant 3 : index
    %c1_44 = arith.constant 1 : index
    %58 = memref.load %arg2[%c3_43, %c1_44] : memref<5x5xf32, #tpu.memory_space<smem>>
    %59 = vector.broadcast %58 : f32 to vector<1x128xf32>
    %60 = arith.mulf %57, %59 : vector<1x128xf32>
    %61 = arith.addf %55, %60 : vector<1x128xf32>
    %c4_45 = arith.constant 4 : index
    %c0_46 = arith.constant 0 : index
    %c0_47 = arith.constant 0 : index
    %62 = vector.load %arg1[%c4_45, %c0_46, %c0_47] : memref<5x1x128xf32, #tpu.memory_space<vmem>>, vector<1x1x128xf32>
    %63 = vector.shape_cast %62 : vector<1x1x128xf32> to vector<1x128xf32>
    %c4_48 = arith.constant 4 : index
    %c1_49 = arith.constant 1 : index
    %64 = memref.load %arg2[%c4_48, %c1_49] : memref<5x5xf32, #tpu.memory_space<smem>>
    %65 = vector.broadcast %64 : f32 to vector<1x128xf32>
    %66 = arith.mulf %63, %65 : vector<1x128xf32>
    %67 = arith.addf %61, %66 : vector<1x128xf32>
    %cst_50 = arith.constant 5.000000e-01 : f32
    %68 = vector.broadcast %cst_50 : f32 to vector<1x128xf32>
    %69 = arith.mulf %68, %67 : vector<1x128xf32>
    %70 = math.tanh %69 : vector<1x128xf32>
    %cst_51 = arith.constant 5.000000e-01 : f32
    %71 = vector.broadcast %cst_51 : f32 to vector<1x128xf32>
    %72 = arith.mulf %71, %70 : vector<1x128xf32>
    %cst_52 = arith.constant 5.000000e-01 : f32
    %73 = vector.broadcast %cst_52 : f32 to vector<1x128xf32>
    %74 = arith.addf %72, %73 : vector<1x128xf32>
    %c1_53 = arith.constant 1 : index
    %c0_54 = arith.constant 0 : index
    %c0_55 = arith.constant 0 : index
    %75 = vector.load %arg3[%c1_53, %c0_54, %c0_55] : memref<5x1x128xf32, #tpu.memory_space<vmem>>, vector<1x1x128xf32>
    %76 = vector.shape_cast %75 : vector<1x1x128xf32> to vector<1x128xf32>
    %77 = vector.shape_cast %74 : vector<1x128xf32> to vector<1x1x128xf32>
    tpu.vector_store %arg3[%c1_53, %c0_54, %c0_55], %77 {strides = array<i32>} : memref<5x1x128xf32, #tpu.memory_space<vmem>>, vector<1x1x128xf32>,
    %c0_56 = arith.constant 0 : index
    %c0_57 = arith.constant 0 : index
    %c0_58 = arith.constant 0 : index
    %78 = vector.load %arg1[%c0_56, %c0_57, %c0_58] : memref<5x1x128xf32, #tpu.memory_space<vmem>>, vector<1x1x128xf32>
    %79 = vector.shape_cast %78 : vector<1x1x128xf32> to vector<1x128xf32>
    %c0_59 = arith.constant 0 : index
    %c2_60 = arith.constant 2 : index
    %80 = memref.load %arg2[%c0_59, %c2_60] : memref<5x5xf32, #tpu.memory_space<smem>>
    %81 = vector.broadcast %80 : f32 to vector<1x128xf32>
    %82 = arith.mulf %79, %81 : vector<1x128xf32>
    %c1_61 = arith.constant 1 : index
    %c0_62 = arith.constant 0 : index
    %c0_63 = arith.constant 0 : index
    %83 = vector.load %arg1[%c1_61, %c0_62, %c0_63] : memref<5x1x128xf32, #tpu.memory_space<vmem>>, vector<1x1x128xf32>
    %84 = vector.shape_cast %83 : vector<1x1x128xf32> to vector<1x128xf32>
    %c1_64 = arith.constant 1 : index
    %c2_65 = arith.constant 2 : index
    %85 = memref.load %arg2[%c1_64, %c2_65] : memref<5x5xf32, #tpu.memory_space<smem>>
    %86 = vector.broadcast %85 : f32 to vector<1x128xf32>
    %87 = arith.mulf %84, %86 : vector<1x128xf32>
    %88 = arith.addf %82, %87 : vector<1x128xf32>
    %c2_66 = arith.constant 2 : index
    %c0_67 = arith.constant 0 : index
    %c0_68 = arith.constant 0 : index
    %89 = vector.load %arg1[%c2_66, %c0_67, %c0_68] : memref<5x1x128xf32, #tpu.memory_space<vmem>>, vector<1x1x128xf32>
    %90 = vector.shape_cast %89 : vector<1x1x128xf32> to vector<1x128xf32>
    %c2_69 = arith.constant 2 : index
    %c2_70 = arith.constant 2 : index
    %91 = memref.load %arg2[%c2_69, %c2_70] : memref<5x5xf32, #tpu.memory_space<smem>>
    %92 = vector.broadcast %91 : f32 to vector<1x128xf32>
    %93 = arith.mulf %90, %92 : vector<1x128xf32>
    %94 = arith.addf %88, %93 : vector<1x128xf32>
    %c3_71 = arith.constant 3 : index
    %c0_72 = arith.constant 0 : index
    %c0_73 = arith.constant 0 : index
    %95 = vector.load %arg1[%c3_71, %c0_72, %c0_73] : memref<5x1x128xf32, #tpu.memory_space<vmem>>, vector<1x1x128xf32>
    %96 = vector.shape_cast %95 : vector<1x1x128xf32> to vector<1x128xf32>
    %c3_74 = arith.constant 3 : index
    %c2_75 = arith.constant 2 : index
    %97 = memref.load %arg2[%c3_74, %c2_75] : memref<5x5xf32, #tpu.memory_space<smem>>
    %98 = vector.broadcast %97 : f32 to vector<1x128xf32>
    %99 = arith.mulf %96, %98 : vector<1x128xf32>
    %100 = arith.addf %94, %99 : vector<1x128xf32>
    %c4_76 = arith.constant 4 : index
    %c0_77 = arith.constant 0 : index
    %c0_78 = arith.constant 0 : index
    %101 = vector.load %arg1[%c4_76, %c0_77, %c0_78] : memref<5x1x128xf32, #tpu.memory_space<vmem>>, vector<1x1x128xf32>
    %102 = vector.shape_cast %101 : vector<1x1x128xf32> to vector<1x128xf32>
    %c4_79 = arith.constant 4 : index
    %c2_80 = arith.constant 2 : index
    %103 = memref.load %arg2[%c4_79, %c2_80] : memref<5x5xf32, #tpu.memory_space<smem>>
    %104 = vector.broadcast %103 : f32 to vector<1x128xf32>
    %105 = arith.mulf %102, %104 : vector<1x128xf32>
    %106 = arith.addf %100, %105 : vector<1x128xf32>
    %cst_81 = arith.constant 5.000000e-01 : f32
    %107 = vector.broadcast %cst_81 : f32 to vector<1x128xf32>
    %108 = arith.mulf %107, %106 : vector<1x128xf32>
    %109 = math.tanh %108 : vector<1x128xf32>
    %cst_82 = arith.constant 5.000000e-01 : f32
    %110 = vector.broadcast %cst_82 : f32 to vector<1x128xf32>
    %111 = arith.mulf %110, %109 : vector<1x128xf32>
    %cst_83 = arith.constant 5.000000e-01 : f32
    %112 = vector.broadcast %cst_83 : f32 to vector<1x128xf32>
    %113 = arith.addf %111, %112 : vector<1x128xf32>
    %c2_84 = arith.constant 2 : index
    %c0_85 = arith.constant 0 : index
    %c0_86 = arith.constant 0 : index
    %114 = vector.load %arg3[%c2_84, %c0_85, %c0_86] : memref<5x1x128xf32, #tpu.memory_space<vmem>>, vector<1x1x128xf32>
    %115 = vector.shape_cast %114 : vector<1x1x128xf32> to vector<1x128xf32>
    %116 = vector.shape_cast %113 : vector<1x128xf32> to vector<1x1x128xf32>
    tpu.vector_store %arg3[%c2_84, %c0_85, %c0_86], %116 {strides = array<i32>} : memref<5x1x128xf32, #tpu.memory_space<vmem>>, vector<1x1x128xf32>,
    %c0_87 = arith.constant 0 : index
    %c0_88 = arith.constant 0 : index
    %c0_89 = arith.constant 0 : index
    %117 = vector.load %arg1[%c0_87, %c0_88, %c0_89] : memref<5x1x128xf32, #tpu.memory_space<vmem>>, vector<1x1x128xf32>
    %118 = vector.shape_cast %117 : vector<1x1x128xf32> to vector<1x128xf32>
    %c0_90 = arith.constant 0 : index
    %c3_91 = arith.constant 3 : index
    %119 = memref.load %arg2[%c0_90, %c3_91] : memref<5x5xf32, #tpu.memory_space<smem>>
    %120 = vector.broadcast %119 : f32 to vector<1x128xf32>
    %121 = arith.mulf %118, %120 : vector<1x128xf32>
    %c1_92 = arith.constant 1 : index
    %c0_93 = arith.constant 0 : index
    %c0_94 = arith.constant 0 : index
    %122 = vector.load %arg1[%c1_92, %c0_93, %c0_94] : memref<5x1x128xf32, #tpu.memory_space<vmem>>, vector<1x1x128xf32>
    %123 = vector.shape_cast %122 : vector<1x1x128xf32> to vector<1x128xf32>
    %c1_95 = arith.constant 1 : index
    %c3_96 = arith.constant 3 : index
    %124 = memref.load %arg2[%c1_95, %c3_96] : memref<5x5xf32, #tpu.memory_space<smem>>
    %125 = vector.broadcast %124 : f32 to vector<1x128xf32>
    %126 = arith.mulf %123, %125 : vector<1x128xf32>
    %127 = arith.addf %121, %126 : vector<1x128xf32>
    %c2_97 = arith.constant 2 : index
    %c0_98 = arith.constant 0 : index
    %c0_99 = arith.constant 0 : index
    %128 = vector.load %arg1[%c2_97, %c0_98, %c0_99] : memref<5x1x128xf32, #tpu.memory_space<vmem>>, vector<1x1x128xf32>
    %129 = vector.shape_cast %128 : vector<1x1x128xf32> to vector<1x128xf32>
    %c2_100 = arith.constant 2 : index
    %c3_101 = arith.constant 3 : index
    %130 = memref.load %arg2[%c2_100, %c3_101] : memref<5x5xf32, #tpu.memory_space<smem>>
    %131 = vector.broadcast %130 : f32 to vector<1x128xf32>
    %132 = arith.mulf %129, %131 : vector<1x128xf32>
    %133 = arith.addf %127, %132 : vector<1x128xf32>
    %c3_102 = arith.constant 3 : index
    %c0_103 = arith.constant 0 : index
    %c0_104 = arith.constant 0 : index
    %134 = vector.load %arg1[%c3_102, %c0_103, %c0_104] : memref<5x1x128xf32, #tpu.memory_space<vmem>>, vector<1x1x128xf32>
    %135 = vector.shape_cast %134 : vector<1x1x128xf32> to vector<1x128xf32>
    %c3_105 = arith.constant 3 : index
    %c3_106 = arith.constant 3 : index
    %136 = memref.load %arg2[%c3_105, %c3_106] : memref<5x5xf32, #tpu.memory_space<smem>>
    %137 = vector.broadcast %136 : f32 to vector<1x128xf32>
    %138 = arith.mulf %135, %137 : vector<1x128xf32>
    %139 = arith.addf %133, %138 : vector<1x128xf32>
    %c4_107 = arith.constant 4 : index
    %c0_108 = arith.constant 0 : index
    %c0_109 = arith.constant 0 : index
    %140 = vector.load %arg1[%c4_107, %c0_108, %c0_109] : memref<5x1x128xf32, #tpu.memory_space<vmem>>, vector<1x1x128xf32>
    %141 = vector.shape_cast %140 : vector<1x1x128xf32> to vector<1x128xf32>
    %c4_110 = arith.constant 4 : index
    %c3_111 = arith.constant 3 : index
    %142 = memref.load %arg2[%c4_110, %c3_111] : memref<5x5xf32, #tpu.memory_space<smem>>
    %143 = vector.broadcast %142 : f32 to vector<1x128xf32>
    %144 = arith.mulf %141, %143 : vector<1x128xf32>
    %145 = arith.addf %139, %144 : vector<1x128xf32>
    %cst_112 = arith.constant 5.000000e-01 : f32
    %146 = vector.broadcast %cst_112 : f32 to vector<1x128xf32>
    %147 = arith.mulf %146, %145 : vector<1x128xf32>
    %148 = math.tanh %147 : vector<1x128xf32>
    %cst_113 = arith.constant 5.000000e-01 : f32
    %149 = vector.broadcast %cst_113 : f32 to vector<1x128xf32>
    %150 = arith.mulf %149, %148 : vector<1x128xf32>
    %cst_114 = arith.constant 5.000000e-01 : f32
    %151 = vector.broadcast %cst_114 : f32 to vector<1x128xf32>
    %152 = arith.addf %150, %151 : vector<1x128xf32>
    %c3_115 = arith.constant 3 : index
    %c0_116 = arith.constant 0 : index
    %c0_117 = arith.constant 0 : index
    %153 = vector.load %arg3[%c3_115, %c0_116, %c0_117] : memref<5x1x128xf32, #tpu.memory_space<vmem>>, vector<1x1x128xf32>
    %154 = vector.shape_cast %153 : vector<1x1x128xf32> to vector<1x128xf32>
    %155 = vector.shape_cast %152 : vector<1x128xf32> to vector<1x1x128xf32>
    tpu.vector_store %arg3[%c3_115, %c0_116, %c0_117], %155 {strides = array<i32>} : memref<5x1x128xf32, #tpu.memory_space<vmem>>, vector<1x1x128xf32>,
    %c0_118 = arith.constant 0 : index
    %c0_119 = arith.constant 0 : index
    %c0_120 = arith.constant 0 : index
    %156 = vector.load %arg1[%c0_118, %c0_119, %c0_120] : memref<5x1x128xf32, #tpu.memory_space<vmem>>, vector<1x1x128xf32>
    %157 = vector.shape_cast %156 : vector<1x1x128xf32> to vector<1x128xf32>
    %c0_121 = arith.constant 0 : index
    %c4_122 = arith.constant 4 : index
    %158 = memref.load %arg2[%c0_121, %c4_122] : memref<5x5xf32, #tpu.memory_space<smem>>
    %159 = vector.broadcast %158 : f32 to vector<1x128xf32>
    %160 = arith.mulf %157, %159 : vector<1x128xf32>
    %c1_123 = arith.constant 1 : index
    %c0_124 = arith.constant 0 : index
    %c0_125 = arith.constant 0 : index
    %161 = vector.load %arg1[%c1_123, %c0_124, %c0_125] : memref<5x1x128xf32, #tpu.memory_space<vmem>>, vector<1x1x128xf32>
    %162 = vector.shape_cast %161 : vector<1x1x128xf32> to vector<1x128xf32>
    %c1_126 = arith.constant 1 : index
    %c4_127 = arith.constant 4 : index
    %163 = memref.load %arg2[%c1_126, %c4_127] : memref<5x5xf32, #tpu.memory_space<smem>>
    %164 = vector.broadcast %163 : f32 to vector<1x128xf32>
    %165 = arith.mulf %162, %164 : vector<1x128xf32>
    %166 = arith.addf %160, %165 : vector<1x128xf32>
    %c2_128 = arith.constant 2 : index
    %c0_129 = arith.constant 0 : index
    %c0_130 = arith.constant 0 : index
    %167 = vector.load %arg1[%c2_128, %c0_129, %c0_130] : memref<5x1x128xf32, #tpu.memory_space<vmem>>, vector<1x1x128xf32>
    %168 = vector.shape_cast %167 : vector<1x1x128xf32> to vector<1x128xf32>
    %c2_131 = arith.constant 2 : index
    %c4_132 = arith.constant 4 : index
    %169 = memref.load %arg2[%c2_131, %c4_132] : memref<5x5xf32, #tpu.memory_space<smem>>
    %170 = vector.broadcast %169 : f32 to vector<1x128xf32>
    %171 = arith.mulf %168, %170 : vector<1x128xf32>
    %172 = arith.addf %166, %171 : vector<1x128xf32>
    %c3_133 = arith.constant 3 : index
    %c0_134 = arith.constant 0 : index
    %c0_135 = arith.constant 0 : index
    %173 = vector.load %arg1[%c3_133, %c0_134, %c0_135] : memref<5x1x128xf32, #tpu.memory_space<vmem>>, vector<1x1x128xf32>
    %174 = vector.shape_cast %173 : vector<1x1x128xf32> to vector<1x128xf32>
    %c3_136 = arith.constant 3 : index
    %c4_137 = arith.constant 4 : index
    %175 = memref.load %arg2[%c3_136, %c4_137] : memref<5x5xf32, #tpu.memory_space<smem>>
    %176 = vector.broadcast %175 : f32 to vector<1x128xf32>
    %177 = arith.mulf %174, %176 : vector<1x128xf32>
    %178 = arith.addf %172, %177 : vector<1x128xf32>
    %c4_138 = arith.constant 4 : index
    %c0_139 = arith.constant 0 : index
    %c0_140 = arith.constant 0 : index
    %179 = vector.load %arg1[%c4_138, %c0_139, %c0_140] : memref<5x1x128xf32, #tpu.memory_space<vmem>>, vector<1x1x128xf32>
    %180 = vector.shape_cast %179 : vector<1x1x128xf32> to vector<1x128xf32>
    %c4_141 = arith.constant 4 : index
    %c4_142 = arith.constant 4 : index
    %181 = memref.load %arg2[%c4_141, %c4_142] : memref<5x5xf32, #tpu.memory_space<smem>>
    %182 = vector.broadcast %181 : f32 to vector<1x128xf32>
    %183 = arith.mulf %180, %182 : vector<1x128xf32>
    %184 = arith.addf %178, %183 : vector<1x128xf32>
    %cst_143 = arith.constant 5.000000e-01 : f32
    %185 = vector.broadcast %cst_143 : f32 to vector<1x128xf32>
    %186 = arith.mulf %185, %184 : vector<1x128xf32>
    %187 = math.tanh %186 : vector<1x128xf32>
    %cst_144 = arith.constant 5.000000e-01 : f32
    %188 = vector.broadcast %cst_144 : f32 to vector<1x128xf32>
    %189 = arith.mulf %188, %187 : vector<1x128xf32>
    %cst_145 = arith.constant 5.000000e-01 : f32
    %190 = vector.broadcast %cst_145 : f32 to vector<1x128xf32>
    %191 = arith.addf %189, %190 : vector<1x128xf32>
    %c4_146 = arith.constant 4 : index
    %c0_147 = arith.constant 0 : index
    %c0_148 = arith.constant 0 : index
    %192 = vector.load %arg3[%c4_146, %c0_147, %c0_148] : memref<5x1x128xf32, #tpu.memory_space<vmem>>, vector<1x1x128xf32>
    %193 = vector.shape_cast %192 : vector<1x1x128xf32> to vector<1x128xf32>
    %194 = vector.shape_cast %191 : vector<1x128xf32> to vector<1x1x128xf32>
    tpu.vector_store %arg3[%c4_146, %c0_147, %c0_148], %194 {strides = array<i32>} : memref<5x1x128xf32, #tpu.memory_space<vmem>>, vector<1x1x128xf32>,
    return
  }
  func.func @transform_0(%arg0: i32) -> (i32, i32, i32) {
    %c0_i32 = arith.constant 0 : i32
    %c0_i32_0 = arith.constant 0 : i32
    %c0_i32_1 = arith.constant 0 : i32
    return %c0_i32, %arg0, %c0_i32_0 : i32, i32, i32
  }
  func.func @transform_1(%arg0: i32) -> (i32, i32) {
    %c0_i32 = arith.constant 0 : i32
    %c0_i32_0 = arith.constant 0 : i32
    %c0_i32_1 = arith.constant 0 : i32
    return %c0_i32, %c0_i32_0 : i32, i32
  }
  func.func @transform_2(%arg0: i32) -> (i32, i32, i32) {
    %c0_i32 = arith.constant 0 : i32
    %c0_i32_0 = arith.constant 0 : i32
    %c0_i32_1 = arith.constant 0 : i32
    return %c0_i32, %arg0, %c0_i32_0 : i32, i32, i32
  }
}

</mosaic_0001>

<llo_original>
// kernel: tpu_custom_call.1
$region0: #{tpu_custom_call.1}
  #allocation0 [shape = 'u32[]', space=smem, size = 0x4, offset = 0x4, fixed_abs, tag = 'smem constant byte address 0x4 - core index']
  #allocation1 [shape = 'u32[144,128]{1,0:T(1,128)}', space=vmem, size = 0x12000, scoped, tag = 'internal scratch']
  %s0 = inlined_call_operand.hbm [shape: f32[5,1,128], index: 0, kind: input, shape index: {}]
  %s1 = inlined_call_operand.hbm [shape: f32[5,5], index: 1, kind: input, shape index: {}]
  %s2 = inlined_call_operand.hbm [shape: f32[5,1,128], index: 2, kind: output, shape index: {}]
  %s3 = sld [smem:[#allocation0]]
  $region26: #{tpu_custom_call.1} parent=0
    _
  %s5 = ssub.s32 1, %s3
  %s6 = scalar_select 0, %s5, %s3
  $region1: #{tpu_custom_call.1} parent=0
    #allocation2 [shape = 'u8[2560]{0}', space=vmem, size = 0xc00, scoped, tag = 'input window, operand 0, single buffered']
    #allocation3 [shape = 's32[1]{0}', space=sflag, size = 0x4, scoped, tag = 'scoped memory for tpu_custom_call.1']
    #allocation4 [shape = 's32[1]{0}', space=sflag, size = 0x4, scoped, tag = 'scoped memory for tpu_custom_call.1']
    #allocation5 [shape = 's32[1]{0}', space=sflag, size = 0x4, scoped, tag = 'scoped memory for tpu_custom_call.1']
    #allocation6 [shape = 'u8[4096]{0}', space=smem, size = 0x1000, scoped, tag = 'input window, operand 1, single buffered']
    #allocation7 [shape = 'u8[2560]{0}', space=vmem, size = 0xc00, scoped, tag = 'output window, operand 0, single buffered']
    %7 = vsyncpa [#allocation3], 0
    %8 = vsyncpa [#allocation5], 0
    %9 = vsyncpa [#allocation4], 0
    // Predicated region
    $region2: #{tpu_custom_call.1} parent=1 // pred_check
      _
    $region3: #{tpu_custom_call.1} parent=1 // pred_check_branch
      %11 = sbr.rel (0) target = $region5
    $region4: #{tpu_custom_call.1} parent=1 // pred_region
      %s13 = ssub.s32 80, 80
      %14 = vsyncadd [#allocation3], %s13
      %s15 = sshll.u32 [#allocation2], 4
      %s16 = int_to_ptr.vmem [resolvable:$true] %s15
      %21 = dma.hbm_to_vmem [thread:$0]  %s0, 80, %s16, [#allocation3], 16, 16, 1
    $region5: #{tpu_custom_call.1} parent=1 // pred_fallthru
      _
    // Predicated region
    $region6: #{tpu_custom_call.1} parent=1 // pred_check
      _
    $region7: #{tpu_custom_call.1} parent=1 // pred_check_branch
      %23 = sbr.rel (0) target = $region9
    $region8: #{tpu_custom_call.1} parent=1 // pred_region
      %s25 = ssub.s32 128, 128
      %26 = vsyncadd [#allocation5], %s25
      %29 = dma.hbm_to_smem %s1, 128, [#allocation6], [#allocation5]
    $region9: #{tpu_custom_call.1} parent=1 // pred_fallthru
      _
    // Predicated region
    $region10: #{tpu_custom_call.1} parent=1 // pred_check
      _
    $region11: #{tpu_custom_call.1} parent=1 // pred_check_branch
      %31 = sbr.rel (0) target = $region13
    $region12: #{tpu_custom_call.1} parent=1 // pred_region
      %32 = dma.done [#allocation3], 80
    $region13: #{tpu_custom_call.1} parent=1 // pred_fallthru
      _
    // Predicated region
    $region14: #{tpu_custom_call.1} parent=1 // pred_check
      _
    $region15: #{tpu_custom_call.1} parent=1 // pred_check_branch
      %34 = sbr.rel (0) target = $region17
    $region16: #{tpu_custom_call.1} parent=1 // pred_region
      %35 = dma.done [#allocation5], 128
    $region17: #{tpu_custom_call.1} parent=1 // pred_fallthru
      _
    %36 = sfence
    %v37 = vld [vmem:[#allocation2] sm:$0x1]
    %s38 = sld [smem:[#allocation6]]
    %v39 = vstv %s38
    %v40 = vmul.f32 %v37, %v39
    %s41 = scalar_lea.vmem [#allocation2], 1
    %v42 = vld [vmem:[%s41] sm:$0x1]
    %s43 = sld [smem:[#allocation6 + $0x80]]
    %v44 = vstv %s43
    %v45 = vmul.f32 %v42, %v44
    %v46 = vadd.f32 %v40, %v45
    %s47 = scalar_lea.vmem [#allocation2], 2
    %v48 = vld [vmem:[%s47] sm:$0x1]
    %s49 = sld [smem:[#allocation6 + $0x100]]
    %v50 = vstv %s49
    %v51 = vmul.f32 %v48, %v50
    %v52 = vadd.f32 %v46, %v51
    %s53 = scalar_lea.vmem [#allocation2], 3
    %v54 = vld [vmem:[%s53] sm:$0x1]
    %s55 = sld [smem:[#allocation6 + $0x180]]
    %v56 = vstv %s55
    %v57 = vmul.f32 %v54, %v56
    %v58 = vadd.f32 %v52, %v57
    %s59 = scalar_lea.vmem [#allocation2], 4
    %v60 = vld [vmem:[%s59] sm:$0x1]
    %s61 = sld [smem:[#allocation6 + $0x200]]
    %v62 = vstv %s61
    %v63 = vmul.f32 %v60, %v62
    %v64 = vadd.f32 %v58, %v63
    %v65 = vmul.f32 %v64, 0.5
    %v66 = vtanh.pop %v65
    %v67 = vmul.f32 %v66, 0.5
    %v68 = vadd.f32 %v67, 0.5
    %69 = vst [vmem:[#allocation7] sm:$0x1] %v68
    %v70 = vld [vmem:[#allocation2] sm:$0x1]
    %s71 = sld [smem:[#allocation6 + $0x1]]
    %v72 = vstv %s71
    %v73 = vmul.f32 %v70, %v72
    %v74 = vld [vmem:[%s41] sm:$0x1]
    %s75 = sld [smem:[#allocation6 + $0x81]]
    %v76 = vstv %s75
    %v77 = vmul.f32 %v74, %v76
    %v78 = vadd.f32 %v73, %v77
    %v79 = vld [vmem:[%s47] sm:$0x1]
    %s80 = sld [smem:[#allocation6 + $0x101]]
    %v81 = vstv %s80
    %v82 = vmul.f32 %v79, %v81
    %v83 = vadd.f32 %v78, %v82
    %v84 = vld [vmem:[%s53] sm:$0x1]
    %s85 = sld [smem:[#allocation6 + $0x181]]
    %v86 = vstv %s85
    %v87 = vmul.f32 %v84, %v86
    %v88 = vadd.f32 %v83, %v87
    %v89 = vld [vmem:[%s59] sm:$0x1]
    %s90 = sld [smem:[#allocation6 + $0x201]]
    %v91 = vstv %s90
    %v92 = vmul.f32 %v89, %v91
    %v93 = vadd.f32 %v88, %v92
    %v94 = vmul.f32 %v93, 0.5
    %v95 = vtanh.pop %v94
    %v96 = vmul.f32 %v95, 0.5
    %v97 = vadd.f32 %v96, 0.5
    %s98 = scalar_lea.vmem [#allocation7], 1
    %99 = vst [vmem:[%s98] sm:$0x1] %v97
    %v100 = vld [vmem:[#allocation2] sm:$0x1]
    %s101 = sld [smem:[#allocation6 + $0x2]]
    %v102 = vstv %s101
    %v103 = vmul.f32 %v100, %v102
    %v104 = vld [vmem:[%s41] sm:$0x1]
    %s105 = sld [smem:[#allocation6 + $0x82]]
    %v106 = vstv %s105
    %v107 = vmul.f32 %v104, %v106
    %v108 = vadd.f32 %v103, %v107
    %v109 = vld [vmem:[%s47] sm:$0x1]
    %s110 = sld [smem:[#allocation6 + $0x102]]
    %v111 = vstv %s110
    %v112 = vmul.f32 %v109, %v111
    %v113 = vadd.f32 %v108, %v112
    %v114 = vld [vmem:[%s53] sm:$0x1]
    %s115 = sld [smem:[#allocation6 + $0x182]]
    %v116 = vstv %s115
    %v117 = vmul.f32 %v114, %v116
    %v118 = vadd.f32 %v113, %v117
    %v119 = vld [vmem:[%s59] sm:$0x1]
    %s120 = sld [smem:[#allocation6 + $0x202]]
    %v121 = vstv %s120
    %v122 = vmul.f32 %v119, %v121
    %v123 = vadd.f32 %v118, %v122
    %v124 = vmul.f32 %v123, 0.5
    %v125 = vtanh.pop %v124
    %v126 = vmul.f32 %v125, 0.5
    %v127 = vadd.f32 %v126, 0.5
    %s128 = scalar_lea.vmem [#allocation7], 2
    %129 = vst [vmem:[%s128] sm:$0x1] %v127
    %v130 = vld [vmem:[#allocation2] sm:$0x1]
    %s131 = sld [smem:[#allocation6 + $0x3]]
    %v132 = vstv %s131
    %v133 = vmul.f32 %v130, %v132
    %v134 = vld [vmem:[%s41] sm:$0x1]
    %s135 = sld [smem:[#allocation6 + $0x83]]
    %v136 = vstv %s135
    %v137 = vmul.f32 %v134, %v136
    %v138 = vadd.f32 %v133, %v137
    %v139 = vld [vmem:[%s47] sm:$0x1]
    %s140 = sld [smem:[#allocation6 + $0x103]]
    %v141 = vstv %s140
    %v142 = vmul.f32 %v139, %v141
    %v143 = vadd.f32 %v138, %v142
    %v144 = vld [vmem:[%s53] sm:$0x1]
    %s145 = sld [smem:[#allocation6 + $0x183]]
    %v146 = vstv %s145
    %v147 = vmul.f32 %v144, %v146
    %v148 = vadd.f32 %v143, %v147
    %v149 = vld [vmem:[%s59] sm:$0x1]
    %s150 = sld [smem:[#allocation6 + $0x203]]
    %v151 = vstv %s150
    %v152 = vmul.f32 %v149, %v151
    %v153 = vadd.f32 %v148, %v152
    %v154 = vmul.f32 %v153, 0.5
    %v155 = vtanh.pop %v154
    %v156 = vmul.f32 %v155, 0.5
    %v157 = vadd.f32 %v156, 0.5
    %s158 = scalar_lea.vmem [#allocation7], 3
    %159 = vst [vmem:[%s158] sm:$0x1] %v157
    %v160 = vld [vmem:[#allocation2] sm:$0x1]
    %s161 = sld [smem:[#allocation6 + $0x4]]
    %v162 = vstv %s161
    %v163 = vmul.f32 %v160, %v162
    %v164 = vld [vmem:[%s41] sm:$0x1]
    %s165 = sld [smem:[#allocation6 + $0x84]]
    %v166 = vstv %s165
    %v167 = vmul.f32 %v164, %v166
    %v168 = vadd.f32 %v163, %v167
    %v169 = vld [vmem:[%s47] sm:$0x1]
    %s170 = sld [smem:[#allocation6 + $0x104]]
    %v171 = vstv %s170
    %v172 = vmul.f32 %v169, %v171
    %v173 = vadd.f32 %v168, %v172
    %v174 = vld [vmem:[%s53] sm:$0x1]
    %s175 = sld [smem:[#allocation6 + $0x184]]
    %v176 = vstv %s175
    %v177 = vmul.f32 %v174, %v176
    %v178 = vadd.f32 %v173, %v177
    %v179 = vld [vmem:[%s59] sm:$0x1]
    %s180 = sld [smem:[#allocation6 + $0x204]]
    %v181 = vstv %s180
    %v182 = vmul.f32 %v179, %v181
    %v183 = vadd.f32 %v178, %v182
    %v184 = vmul.f32 %v183, 0.5
    %v185 = vtanh.pop %v184
    %v186 = vmul.f32 %v185, 0.5
    %v187 = vadd.f32 %v186, 0.5
    %s188 = scalar_lea.vmem [#allocation7], 4
    %189 = vst [vmem:[%s188] sm:$0x1] %v187
    // Predicated region
    $region18: #{tpu_custom_call.1} parent=1 // pred_check
      _
    $region19: #{tpu_custom_call.1} parent=1 // pred_check_branch
      %191 = sbr.rel (0) target = $region21
    $region20: #{tpu_custom_call.1} parent=1 // pred_region
      %s193 = ssub.s32 80, 80
      %194 = vsyncadd [#allocation4], %s193
      %s195 = sshll.u32 [#allocation7], 4
      %s196 = int_to_ptr.vmem [resolvable:$true] %s195
      %201 = dma.vmem_to_hbm [thread:$0]  %s196, 80, %s2, [#allocation4], 16, 16, 1
    $region21: #{tpu_custom_call.1} parent=1 // pred_fallthru
      _
    // Predicated region
    $region22: #{tpu_custom_call.1} parent=1 // pred_check
      _
    $region23: #{tpu_custom_call.1} parent=1 // pred_check_branch
      %203 = sbr.rel (0) target = $region25
    $region24: #{tpu_custom_call.1} parent=1 // pred_region
      %204 = dma.done [#allocation4], 80
    $region25: #{tpu_custom_call.1} parent=1 // pred_fallthru
      _
    %205 = vsyncpa [#allocation3], 1
    %206 = vsyncpa [#allocation4], 1
    %207 = vsyncpa [#allocation5], 1

</llo_original>
